<compile_context>
chip_gen: v5e
topology: v5e:2x2
jax: 0.10.0
libtpu: 0.0.40
codegen_flags: <defaults>
</compile_context>

<pallas_src>
import jax
import jax.numpy as jnp
from jax.experimental import pallas as pl
from jax.experimental.pallas import tpu as pltpu


def policy_kernel(x_ref, w1_ref, b1_ref, w2_ref, b2_ref, out_ref):
    # fc1: (H, In) @ (In, TB) -> (H, TB)   canonical MXU matmul, weights as LHS.
    h = jnp.dot(w1_ref[...], x_ref[...], preferred_element_type=jnp.float32)
    h = jnp.maximum(h + b1_ref[...], 0.0)            # bias + ReLU in f32

    # fc2: (Out, H) @ (H, TB) -> (Out, TB)
    logits = jnp.dot(w2_ref[...], h.astype(jnp.bfloat16),
                     preferred_element_type=jnp.float32)
    logits = logits + b2_ref[...]

    # Numerically stable softmax along the sublane (Out) axis -> XLU reductions.
    m = jnp.max(logits, axis=0, keepdims=True)
    e = jnp.exp(logits - m)
    denom = jnp.sum(e, axis=0, keepdims=True)
    out_ref[...] = (e / denom).astype(out_ref.dtype)  # exact normalization


def _round_up(x, m):
    return -(-x // m) * m


def policy_network_forward(x, w1, b1, w2, b2, *, block_b=2048):
    """Fused forward pass.

    x:  (B, In) activations.
    w1: (H, In), b1: (H,)   -- PyTorch nn.Linear layout, used as-is (no transpose).
    w2: (Out, H), b2: (Out,)
    Returns (B, Out) softmax probabilities in f32.
    """
    B, In = x.shape
    H, _ = w1.shape
    Out, _ = w2.shape

    # Feature-major (lane-dense) layout: batch maps to the 128-lane axis.
    xt_bf = jnp.asarray(x, jnp.bfloat16).T            # (In, B)
    w1_bf = jnp.asarray(w1, jnp.bfloat16)             # (H, In)   matmul LHS
    w2_bf = jnp.asarray(w2, jnp.bfloat16)             # (Out, H)  matmul LHS
    b1_2d = jnp.asarray(b1, jnp.float32)[:, None]     # (H, 1)
    b2_2d = jnp.asarray(b2, jnp.float32)[:, None]     # (Out, 1)

    # Batch tile (last / lane dim of every streamed block).
    if B <= block_b:
        tb = B                                        # single full-dim block (always legal)
    else:
        # Lane-aligned tile, capped so the grid keeps >= 2 steps (v7x megacore).
        tb = min(block_b, _round_up(pl.cdiv(B, 2), 128))
    nblocks = pl.cdiv(B, tb)
    # No wrapper jnp.pad: a partial final block is masked by Pallas; garbage
    # lanes stay column-isolated through the matmuls and per-column softmax.

    cost = pl.CostEstimate(
        flops=2 * B * (In * H + H * Out),
        transcendentals=B * Out,                      # exp in softmax
        bytes_accessed=(2 * B * In + 2 * H * In + 2 * Out * H
                        + 4 * (H + Out) + 4 * B * Out),
    )

    out_t = pl.pallas_call(
        policy_kernel,
        out_shape=jax.ShapeDtypeStruct((Out, B), jnp.float32),
        grid=(nblocks,),
        in_specs=[
            pl.BlockSpec((In, tb), lambda i: (0, i)),   # streamed activations
            pl.BlockSpec((H, In), lambda i: (0, 0)),    # resident weights/biases
            pl.BlockSpec((H, 1), lambda i: (0, 0)),
            pl.BlockSpec((Out, H), lambda i: (0, 0)),
            pl.BlockSpec((Out, 1), lambda i: (0, 0)),
        ],
        out_specs=pl.BlockSpec((Out, tb), lambda i: (0, i)),  # lane-dense stores
        compiler_params=pltpu.CompilerParams(
            dimension_semantics=("parallel",),          # v7x: shard batch over 2 TCs
        ),
        cost_estimate=cost,
    )(xt_bf, w1_bf, b1_2d, w2_bf, b2_2d)

    return out_t.T                                      # (B, Out)


def reference_forward(x, w1, b1, w2, b2):
    h = jnp.maximum(x @ w1.T + b1, 0.0)
    logits = h @ w2.T + b2
    return jax.nn.softmax(logits, axis=-1)


if __name__ == "__main__":
    input_dim, hidden_dim, output_dim = 16, 32, 8
    batch = 4

    key = jax.random.PRNGKey(0)
    kx, k1, k2, k3, k4 = jax.random.split(key, 5)

    x = jax.random.normal(kx, (batch, input_dim), dtype=jnp.float32)
    # Deterministic synthetic parameters in PyTorch nn.Linear shapes.
    w1 = jax.random.normal(k1, (hidden_dim, input_dim), dtype=jnp.float32) * 0.1
    b1 = jax.random.normal(k2, (hidden_dim,), dtype=jnp.float32) * 0.1
    w2 = jax.random.normal(k3, (output_dim, hidden_dim), dtype=jnp.float32) * 0.1
    b2 = jax.random.normal(k4, (output_dim,), dtype=jnp.float32) * 0.1

    out = policy_network_forward(x, w1, b1, w2, b2)
    out = jax.block_until_ready(out)

    ref = reference_forward(x, w1, b1, w2, b2)
    assert out.shape == (batch, output_dim)
    # bf16 matmul inputs -> relaxed element tolerance.
    assert jnp.allclose(out, ref, atol=2e-2, rtol=2e-2)
    # Exact division in the kernel -> rows normalize to 1 within f32 rounding.
    assert jnp.allclose(jnp.sum(out, axis=-1), 1.0, atol=1e-3)

    print("KERNEL_OK")
</pallas_src>

<mosaic_0001>
module attributes {stable_mosaic.version = 11 : i64} {
  func.func @policy_kernel(%arg0: i32, %arg1: memref<16x4xbf16, #tpu.memory_space<vmem>>, %arg2: memref<32x16xbf16, #tpu.memory_space<vmem>>, %arg3: memref<32x1xf32, #tpu.memory_space<vmem>>, %arg4: memref<8x32xbf16, #tpu.memory_space<vmem>>, %arg5: memref<8x1xf32, #tpu.memory_space<vmem>>, %arg6: memref<8x4xf32, #tpu.memory_space<vmem>>) attributes {dimension_semantics = [#tpu.dimension_semantics<parallel>], iteration_bounds = array<i64: 1>, scalar_prefetch = 0 : i64, scratch_operands = 0 : i64, tpu.core_type = #tpu.core_type<tc>, window_params = [{transform_indices = @transform_0, window_bounds = array<i64: 16, 4>}, {pipeline_mode = #tpu.pipeline_mode<synchronous>, transform_indices = @transform_1, window_bounds = array<i64: 32, 16>}, {pipeline_mode = #tpu.pipeline_mode<synchronous>, transform_indices = @transform_2, window_bounds = array<i64: 32, 1>}, {pipeline_mode = #tpu.pipeline_mode<synchronous>, transform_indices = @transform_3, window_bounds = array<i64: 8, 32>}, {pipeline_mode = #tpu.pipeline_mode<synchronous>, transform_indices = @transform_4, window_bounds = array<i64: 8, 1>}, {transform_indices = @transform_5, window_bounds = array<i64: 8, 4>}]} {
    %c0 = arith.constant 0 : index
    %c0_0 = arith.constant 0 : index
    %0 = vector.load %arg2[%c0, %c0_0] : memref<32x16xbf16, #tpu.memory_space<vmem>>, vector<32x16xbf16>
    %c0_1 = arith.constant 0 : index
    %c0_2 = arith.constant 0 : index
    %1 = vector.load %arg1[%c0_1, %c0_2] : memref<16x4xbf16, #tpu.memory_space<vmem>>, vector<16x4xbf16>
    %cst = arith.constant dense<0.000000e+00> : vector<32x4xf32>
    %2 = tpu.matmul %0, %1, %cst {dimension_numbers = #tpu.dot_dimension_numbers<[1], [0], [0], [1], [0, 0, 1, 1], [], []>} : vector<32x16xbf16>, vector<16x4xbf16>, vector<32x4xf32> -> vector<32x4xf32>
    %c0_3 = arith.constant 0 : index
    %c0_4 = arith.constant 0 : index
    %3 = vector.load %arg3[%c0_3, %c0_4] : memref<32x1xf32, #tpu.memory_space<vmem>>, vector<32x1xf32>
    %4 = vector.broadcast %3 : vector<32x1xf32> to vector<32x4xf32>
    %5 = arith.addf %2, %4 : vector<32x4xf32>
    %cst_5 = arith.constant 0.000000e+00 : f32
    %6 = vector.broadcast %cst_5 : f32 to vector<32x4xf32>
    %7 = arith.maximumf %5, %6 : vector<32x4xf32>
    %c0_6 = arith.constant 0 : index
    %c0_7 = arith.constant 0 : index
    %8 = vector.load %arg4[%c0_6, %c0_7] : memref<8x32xbf16, #tpu.memory_space<vmem>>, vector<8x32xbf16>
    %9 = arith.truncf %7 : vector<32x4xf32> to vector<32x4xbf16>
    %cst_8 = arith.constant dense<0.000000e+00> : vector<8x4xf32>
    %10 = tpu.matmul %8, %9, %cst_8 {dimension_numbers = #tpu.dot_dimension_numbers<[1], [0], [0], [1], [0, 0, 1, 1], [], []>} : vector<8x32xbf16>, vector<32x4xbf16>, vector<8x4xf32> -> vector<8x4xf32>
    %c0_9 = arith.constant 0 : index
    %c0_10 = arith.constant 0 : index
    %11 = vector.load %arg5[%c0_9, %c0_10] : memref<8x1xf32, #tpu.memory_space<vmem>>, vector<8x1xf32>
    %12 = vector.broadcast %11 : vector<8x1xf32> to vector<8x4xf32>
    %13 = arith.addf %10, %12 : vector<8x4xf32>
    %cst_11 = arith.constant dense<0xFF800000> : vector<4xf32>
    %14 = vector.multi_reduction <maximumf>, %13, %cst_11 [0] : vector<8x4xf32> to vector<4xf32>
    %15 = vector.shape_cast %14 : vector<4xf32> to vector<1x4xf32>
    %16 = vector.broadcast %15 : vector<1x4xf32> to vector<8x4xf32>
    %17 = arith.subf %13, %16 : vector<8x4xf32>
    %18 = math.exp %17 : vector<8x4xf32>
    %cst_12 = arith.constant dense<0.000000e+00> : vector<4xf32>
    %19 = vector.multi_reduction <add>, %18, %cst_12 [0] : vector<8x4xf32> to vector<4xf32>
    %20 = vector.shape_cast %19 : vector<4xf32> to vector<1x4xf32>
    %21 = vector.broadcast %20 : vector<1x4xf32> to vector<8x4xf32>
    %22 = arith.divf %18, %21 : vector<8x4xf32>
    %c0_13 = arith.constant 0 : index
    %c0_14 = arith.constant 0 : index
    %23 = vector.load %arg6[%c0_13, %c0_14] : memref<8x4xf32, #tpu.memory_space<vmem>>, vector<8x4xf32>
    tpu.vector_store %arg6[%c0_13, %c0_14], %22 {strides = array<i32>} : memref<8x4xf32, #tpu.memory_space<vmem>>, vector<8x4xf32>,
    return
  }
  func.func @transform_0(%arg0: i32) -> (i32, i32) {
    %c0_i32 = arith.constant 0 : i32
    %c0_i32_0 = arith.constant 0 : i32
    return %c0_i32, %arg0 : i32, i32
  }
  func.func @transform_1(%arg0: i32) -> (i32, i32) {
    %c0_i32 = arith.constant 0 : i32
    %c0_i32_0 = arith.constant 0 : i32
    %c0_i32_1 = arith.constant 0 : i32
    return %c0_i32, %c0_i32_0 : i32, i32
  }
  func.func @transform_2(%arg0: i32) -> (i32, i32) {
    %c0_i32 = arith.constant 0 : i32
    %c0_i32_0 = arith.constant 0 : i32
    %c0_i32_1 = arith.constant 0 : i32
    return %c0_i32, %c0_i32_0 : i32, i32
  }
  func.func @transform_3(%arg0: i32) -> (i32, i32) {
    %c0_i32 = arith.constant 0 : i32
    %c0_i32_0 = arith.constant 0 : i32
    %c0_i32_1 = arith.constant 0 : i32
    return %c0_i32, %c0_i32_0 : i32, i32
  }
  func.func @transform_4(%arg0: i32) -> (i32, i32) {
    %c0_i32 = arith.constant 0 : i32
    %c0_i32_0 = arith.constant 0 : i32
    %c0_i32_1 = arith.constant 0 : i32
    return %c0_i32, %c0_i32_0 : i32, i32
  }
  func.func @transform_5(%arg0: i32) -> (i32, i32) {
    %c0_i32 = arith.constant 0 : i32
    %c0_i32_0 = arith.constant 0 : i32
    return %c0_i32, %arg0 : i32, i32
  }
}

</mosaic_0001>

<llo_original>
// kernel: tpu_custom_call.1
$region0: #{tpu_custom_call.1}
  #allocation0 [shape = 'u32[]', space=smem, size = 0x4, offset = 0x4, fixed_abs, tag = 'smem constant byte address 0x4 - core index']
  #allocation1 [shape = 'u32[72,128]{1,0:T(1,128)}', space=vmem, size = 0x9000, scoped, tag = 'internal scratch']
  %s0 = inlined_call_operand.vmem [shape: bf16[16,4], index: 0, kind: input, shape index: {}]
  %s1 = inlined_call_operand.vmem [shape: bf16[32,16], index: 1, kind: input, shape index: {}]
  %s2 = inlined_call_operand.vmem [shape: f32[32,1], index: 2, kind: input, shape index: {}]
  %s3 = inlined_call_operand.vmem [shape: bf16[8,32], index: 3, kind: input, shape index: {}]
  %s4 = inlined_call_operand.vmem [shape: f32[8,1], index: 4, kind: input, shape index: {}]
  %s5 = inlined_call_operand.vmem [shape: f32[8,4], index: 5, kind: output, shape index: {}]
  %s6 = sld [smem:[#allocation0]]
  $region30: #{tpu_custom_call.1} parent=0
    _
  %s8 = ssub.s32 1, %s6
  %s9 = scalar_select 0, %s8, %s6
  // Predicated region
  $region2: #{tpu_custom_call.1} parent=0 // pred_check
    _
  $region3: #{tpu_custom_call.1} parent=0 // pred_check_branch
    %11 = sbr.rel (0) target = $region5
  $region4: #{tpu_custom_call.1} parent=0 // pred_region
    _
  $region5: #{tpu_custom_call.1} parent=0 // pred_fallthru
    _
  // Predicated region
  $region6: #{tpu_custom_call.1} parent=0 // pred_check
    _
  $region7: #{tpu_custom_call.1} parent=0 // pred_check_branch
    %13 = sbr.rel (0) target = $region9
  $region8: #{tpu_custom_call.1} parent=0 // pred_region
    _
  $region9: #{tpu_custom_call.1} parent=0 // pred_fallthru
    _
  // Predicated region
  $region10: #{tpu_custom_call.1} parent=0 // pred_check
    _
  $region11: #{tpu_custom_call.1} parent=0 // pred_check_branch
    %15 = sbr.rel (0) target = $region13
  $region12: #{tpu_custom_call.1} parent=0 // pred_region
    _
  $region13: #{tpu_custom_call.1} parent=0 // pred_fallthru
    _
  // Predicated region
  $region14: #{tpu_custom_call.1} parent=0 // pred_check
    _
  $region15: #{tpu_custom_call.1} parent=0 // pred_check_branch
    %17 = sbr.rel (0) target = $region17
  $region16: #{tpu_custom_call.1} parent=0 // pred_region
    _
  $region17: #{tpu_custom_call.1} parent=0 // pred_fallthru
    _
  // Predicated region
  $region18: #{tpu_custom_call.1} parent=0 // pred_check
    _
  $region19: #{tpu_custom_call.1} parent=0 // pred_check_branch
    %19 = sbr.rel (0) target = $region21
  $region20: #{tpu_custom_call.1} parent=0 // pred_region
    _
  $region21: #{tpu_custom_call.1} parent=0 // pred_fallthru
    _
  %v21 = vld [vmem:[%s1] sm:$0xf]
  %v22 = vld [vmem:[%s1 + $0x4] sm:$0xf]
  %v23 = vld [vmem:[%s1 + $0x8] sm:$0xf]
  %v24 = vld [vmem:[%s1 + $0xc] sm:$0xf]
  %v25 = vld [vmem:[%s0] sm:$0xf]
  %v26 = vld [vmem:[%s0 + $0x4] sm:$0xf]
  %v27 = vld [vmem:[%s2] sm:$0xff]
  %v28 = vld [vmem:[%s2 + $0x8] sm:$0xff]
  %v29 = vld [vmem:[%s2 + $0x10] sm:$0xff]
  %v30 = vld [vmem:[%s2 + $0x18] sm:$0xff]
  %32 = vset.pattern.permute.xlu0 0
  %33 = vperm.xlu0 %32, %v27
  %v34 = vpop.permute.xlu0 %33
  %37 = vset.pattern.permute.xlu0 0
  %38 = vperm.xlu0 %37, %v28
  %v39 = vpop.permute.xlu0 %38
  %42 = vset.pattern.permute.xlu0 0
  %43 = vperm.xlu0 %42, %v29
  %v44 = vpop.permute.xlu0 %43
  %47 = vset.pattern.permute.xlu0 0
  %48 = vperm.xlu0 %47, %v30
  %v49 = vpop.permute.xlu0 %48
  %v55 = vunpack.c.l.b16 %v21
  %v56 = vunpack.c.l.b16 %v22
  %v57 = vunpack.c.l.b16 %v23
  %v58 = vunpack.c.l.b16 %v24
  %v59 = vpack.c.b16 %v56, %v55
  %v60 = vpack.c.b16 %v58, %v57
  %v63 = vunpack.c.l.b16 %v25
  %v64 = vunpack.c.l.b16 %v26
  %v65 = vpack.c.b16 %v64, %v63
  %vm67 = vcmask 130048
  %v69 = vsel %vm67, %v59, 0
  %v72 = vsel %vm67, %v60, 0
  %74 = vmatpush.bf16.msra.mxu0 0
  %75 = vmatpush.bf16.msra.mxu0 0
  %76 = vmatpush.bf16.msra.mxu0 0
  %77 = vmatpush.bf16.msra.mxu0 0
  %78 = vmatpush.bf16.msra.mxu0 0
  %79 = vmatpush.bf16.msra.mxu0 0
  %80 = vmatpush.bf16.msra.mxu0 0
  %81 = vmatpush.bf16.msra.mxu0 %v65
  %82 = vmatmul.bf16.gmra.mxu0 %v69
  %v83 = vpop.f32.mrf.mxu0
  %v84 = vadd.f32 %v34, %v83
  %v85 = vpop.f32.mrf.mxu0
  %v86 = vadd.f32 %v39, %v85
  %87 = vmatmul.bf16.gmra.mxu0 %v72
  %v88 = vpop.f32.mrf.mxu0
  %v89 = vadd.f32 %v44, %v88
  %v90 = vpop.f32.mrf.mxu0
  %v91 = vadd.f32 %v49, %v90
  %92 = vdwg.mxu0
  %v93 = vmax.f32 %v84, 0.0
  %v94 = vmax.f32 %v86, 0.0
  %v95 = vmax.f32 %v89, 0.0
  %v96 = vmax.f32 %v91, 0.0
  %v97 = vld [vmem:[%s3] sm:$0xf]
  %v98 = vpack.c.bf16 %v94, %v93
  %v99 = vpack.c.bf16 %v96, %v95
  %v100 = vld [vmem:[%s4] sm:$0xff]
  %102 = vset.pattern.permute.xlu0 0
  %103 = vperm.xlu0 %102, %v100
  %v104 = vpop.permute.xlu0 %103
  %vm106 = vcmask 261120
  %v108 = vsel %vm106, %v97, 0
  %110 = vmatpush.bf16.msra.mxu0 0
  %111 = vmatpush.bf16.msra.mxu0 0
  %112 = vmatpush.bf16.msra.mxu0 0
  %113 = vmatpush.bf16.msra.mxu0 0
  %114 = vmatpush.bf16.msra.mxu0 0
  %115 = vmatpush.bf16.msra.mxu0 0
  %116 = vmatpush.bf16.msra.mxu0 %v99
  %117 = vmatpush.bf16.msra.mxu0 %v98
  %118 = vmatmul.bf16.gmra.mxu0 %v108
  %v119 = vpop.f32.mrf.mxu0
  %v120 = vadd.f32 %v104, %v119
  %v121 = vpop.f32.mrf.mxu0
  %122 = vdwg.mxu0
  %vm123 = vcmask 31744
  %v124 = vsel %vm123, %v120, -inf
  %v125 = vrot.slane %v124, 4
  %v126 = vmax.f32 %v124, %v125
  %v127 = vrot.slane %v126, 2
  %v128 = vmax.f32 %v126, %v127
  %v129 = vrot.slane %v128, 1
  %v130 = vmax.f32 %v128, %v129
  %v131 = vsub.f32 %v120, %v130
  %v132 = vmul.f32 %v131, 1.442695
  %v133 = vpow.pop %v132
  %v134 = vsel %vm123, %v133, 0.0
  %v135 = vrot.slane %v134, 4
  %v136 = vadd.f32 %v134, %v135
  %v137 = vrot.slane %v136, 2
  %v138 = vadd.f32 %v136, %v137
  %v139 = vrot.slane %v138, 1
  %v140 = vadd.f32 %v138, %v139
  %v141 = vrcp.pop %v140
  %v142 = vmul.f32 %v140, %v141
  %v143 = vsub.f32 1.0, %v142
  %v144 = vmul.f32 %v141, %v143
  %v145 = vadd.f32 %v141, %v144
  %vm146 = vweird.f32 %v140
  %vm147 = vweird.f32 %v141
  %vm148 = vmor %vm146, %vm147
  %v149 = vsel %vm148, %v141, %v145
  %v150 = vand.u32 2147483647, %v140
  %vm151 = vcmp.eq.f32.partialorder %v150, 8.507059e+37
  %v152 = vand.u32 %v140, 2147483648
  %v153 = vor.u32 1.1754944e-38, %v152
  %v154 = vsel %vm151, %v153, %v149
  %v155 = vmul.f32 %v133, %v154
  %156 = vst.msk [vmem:[%s5] sm:$0xff] %vm123, %v155
  // Predicated region
  $region22: #{tpu_custom_call.1} parent=0 // pred_check
    _
  $region23: #{tpu_custom_call.1} parent=0 // pred_check_branch
    %158 = sbr.rel (0) target = $region25
  $region24: #{tpu_custom_call.1} parent=0 // pred_region
    _
  $region25: #{tpu_custom_call.1} parent=0 // pred_fallthru
    _
  // Predicated region
  $region26: #{tpu_custom_call.1} parent=0 // pred_check
    _
  $region27: #{tpu_custom_call.1} parent=0 // pred_check_branch
    %160 = sbr.rel (0) target = $region29
  $region28: #{tpu_custom_call.1} parent=0 // pred_region
    _
  $region29: #{tpu_custom_call.1} parent=0 // pred_fallthru
    _

</llo_original>
